<compile_context>
chip_gen: v7x
topology: tpu7x:2x2x1
jax: 0.10.0
libtpu: 0.0.40
codegen_flags: <defaults>
</compile_context>

<pallas_src>
import functools

import jax
import jax.numpy as jnp
from jax.experimental import pallas as pl
from jax.experimental.pallas import tpu as pltpu


def _round_up(v, m):
    return (v + m - 1) // m * m


def _vmem_budget_bytes():
    """Generation-aware scoped-VMEM budget: ~3/4 of physical, capped at 100 MiB
    (=> ~96-100 MiB on v5e/v6e (128 MiB), ~48 MiB on v7x (64 MiB per TC))."""
    try:
        cap = int(pltpu.get_tpu_info().vmem_capacity_bytes)
    except Exception:
        cap = 64 << 20          # conservative fallback: assume v7x-sized VMEM
    return min((cap * 3) // 4, 100 << 20)


def _mxu_lane_align():
    """MXU-friendly padding: 256 on the 2x256^2 MXU gens (v6e/v7x), else 128."""
    try:
        ver = getattr(pltpu.get_tpu_info(), "chip_version", None)
        name = str(getattr(ver, "name", ver))
        if ("6" in name) or ("7" in name):
            return 256
    except Exception:
        pass
    return 128


# ----------------------------- parameters (init-time) -----------------------

def init_params(key, n_features, n_hidden, n_output):
    """Deterministic init mimicking torch.nn.Linear (uniform +-1/sqrt(fan_in))."""
    k1, k2, k3, k4 = jax.random.split(key, 4)
    bound1 = 1.0 / jnp.sqrt(n_features)
    bound2 = 1.0 / jnp.sqrt(n_hidden)
    w1 = jax.random.uniform(k1, (n_features, n_hidden), jnp.float32, -bound1, bound1)
    b1 = jax.random.uniform(k2, (1, n_hidden), jnp.float32, -bound1, bound1)
    w2 = jax.random.uniform(k3, (n_hidden, n_output), jnp.float32, -bound2, bound2)
    b2 = jax.random.uniform(k4, (1, n_output), jnp.float32, -bound2, bound2)
    return w1, b1, w2, b2


def prepare_params(w1, b1, w2, b2, *, param_dtype=jnp.float32):
    """One-time padding/cast of the Net parameters (hoisted out of the forward).

    Hidden/output dims are zero-padded to lane-/MXU-friendly multiples
    (exact: zero weight rows/cols, ReLU(0)=0).  Biases stay f32 so the
    bias-add / ReLU epilogue runs in f32 even with bf16 weights.
    """
    w1 = jnp.asarray(w1)
    w2 = jnp.asarray(w2)
    b1 = jnp.asarray(b1).reshape(1, -1)
    b2 = jnp.asarray(b2).reshape(1, -1)
    F, H = w1.shape
    O = w2.shape[1]

    align = _mxu_lane_align()
    H_pad = _round_up(H, align if H >= 128 else 128)
    O_pad = _round_up(O, align if O >= 128 else 128)

    w1p = jnp.zeros((F, H_pad), param_dtype).at[:, :H].set(w1.astype(param_dtype))
    b1p = jnp.zeros((1, H_pad), jnp.float32).at[:, :H].set(b1.astype(jnp.float32))
    w2p = jnp.zeros((H_pad, O_pad), param_dtype).at[:H, :O].set(w2.astype(param_dtype))
    b2p = jnp.zeros((1, O_pad), jnp.float32).at[:, :O].set(b2.astype(jnp.float32))
    return {"w1": w1p, "b1": b1p, "w2": w2p, "b2": b2p,
            "n_features": F, "n_hidden": H, "n_output": O}


# ----------------------------------- kernels --------------------------------

def _mlp_resident_kernel(x_ref, w1_ref, b1_ref, w2_ref, b2_ref, o_ref, *, h_chunk):
    """Fused Linear->ReLU->Linear with W1 fully VMEM-resident.

    The hidden dim is processed in <=h_chunk column blocks so the live
    (tile_n, h_chunk) intermediate stays small (no VMEM spills for large H).
    """
    x = x_ref[...].astype(w1_ref.dtype)      # per-tile cast (no-op for f32 params)
    H_pad = w1_ref.shape[1]
    y = None
    for h0 in range(0, H_pad, h_chunk):
        h1 = min(h0 + h_chunk, H_pad)
        h = jnp.dot(x, w1_ref[:, h0:h1], preferred_element_type=jnp.float32)
        h = jnp.maximum(h + b1_ref[:, h0:h1], 0.0)
        t = jnp.dot(h.astype(w2_ref.dtype), w2_ref[h0:h1, :],
                    preferred_element_type=jnp.float32)
        y = t if y is None else y + t
    o_ref[...] = (y + b2_ref[...]).astype(o_ref.dtype)


def _mlp_streamk_kernel(x_ref, w1_ref, b1_ref, w2_ref, b2_ref, o_ref, acc_ref, *,
                        h_chunk):
    """Feature (K) dim streamed over the grid: accumulate x@W1 into a VMEM f32
    scratch, then bias + ReLU + second matmul in the k==last epilogue."""
    k = pl.program_id(1)

    @pl.when(k == 0)
    def _init():
        acc_ref[...] = jnp.zeros_like(acc_ref)

    x = x_ref[...].astype(w1_ref.dtype)
    acc_ref[...] += jnp.dot(x, w1_ref[...], preferred_element_type=jnp.float32)

    @pl.when(k == pl.num_programs(1) - 1)
    def _epilogue():
        H_pad = acc_ref.shape[1]
        y = None
        for h0 in range(0, H_pad, h_chunk):
            h1 = min(h0 + h_chunk, H_pad)
            h = jnp.maximum(acc_ref[:, h0:h1] + b1_ref[:, h0:h1], 0.0)
            t = jnp.dot(h.astype(w2_ref.dtype), w2_ref[h0:h1, :],
                        preferred_element_type=jnp.float32)
            y = t if y is None else y + t
        o_ref[...] = (y + b2_ref[...]).astype(o_ref.dtype)


# ----------------------------------- forward --------------------------------

def net_forward(x, params, *, out_dtype=None, h_chunk=512, stream_features=None):
    """Forward pass of Net.  x:(N, F) -> (N, n_output).

    `params` comes from prepare_params() (padding/casting already done once).
    `stream_features`: None = auto, True/False = force/forbid streaming W1 over
    a K grid axis (used when W1 is too large to keep VMEM-resident).
    """
    w1p, b1p, w2p, b2p = params["w1"], params["b1"], params["w2"], params["b2"]
    N, F = x.shape
    if F != params["n_features"]:
        raise ValueError(f"x has {F} features, params expect {params['n_features']}")
    H_pad = w1p.shape[1]
    O_pad = w2p.shape[1]
    O = params["n_output"]
    out_dtype = jnp.dtype(out_dtype) if out_dtype is not None else x.dtype

    budget = _vmem_budget_bytes()
    wb = jnp.dtype(w1p.dtype).itemsize
    xb = jnp.dtype(x.dtype).itemsize

    # ---- Feature (K) tiling: stream W1 over the grid only when it cannot
    # stay VMEM-resident (and F splits cleanly into 128-multiples). ----------
    # TODO(synk): if F % 128 != 0 AND W1 is too large for VMEM, the producer
    # must supply F zero-padded to 128 (x columns + W1 rows); we never copy x.
    stream = (wb * F * H_pad > budget // 3) if stream_features is None \
        else bool(stream_features)
    stream = stream and (F % 128 == 0)
    tile_f, k_tiles = F, 1
    if stream:
        cands = [t for t in (2048, 1024, 512, 256, 128) if F % t == 0 and t < F]
        if cands:
            tile_f, k_tiles = cands[0], F // cands[0]
        else:
            stream = False

    # ---- Batch tiling: biggest tile that fits the VMEM budget (512-1024 rows
    # reach ~85% of HBM roofline); >=2 tiles so v7x megacore can shard. -------
    hc = min(_round_up(max(h_chunk, 128), 128), H_pad)
    fixed_bytes = 2 * (wb * (tile_f * H_pad + H_pad * O_pad) + 4 * (H_pad + O_pad))
    tile_n = 1024
    while tile_n > 8:
        stream_bytes = 2 * tile_n * (xb * tile_f + 4 * O_pad)   # dbl-buffered x / out
        live_bytes = 4 * tile_n * (H_pad + O_pad + hc)          # acc / h chunk / y
        if fixed_bytes + stream_bytes + live_bytes + (4 << 20) <= budget:
            break
        tile_n //= 2
    tile_n = max(8, min(tile_n, _round_up(N, 8)))
    if N >= 16 and pl.cdiv(N, tile_n) < 2:
        tile_n = _round_up(pl.cdiv(N, 2), 8)    # give v7x's 2 TCs work each
    n_tiles = pl.cdiv(N, tile_n)

    out_shape = jax.ShapeDtypeStruct((N, O_pad), out_dtype)

    def _build(single_buffer_weights):
        pipeline_mode = (pl.Buffered(1)
                         if single_buffer_weights and hasattr(pl, "Buffered")
                         else None)

        def _spec(shape, index_map, *, resident=False):
            # Resident operands (constant index_map) are fetched once; single-
            # buffer them to halve their VMEM footprint.
            if resident and pipeline_mode is not None:
                return pl.BlockSpec(shape, index_map, pipeline_mode=pipeline_mode)
            return pl.BlockSpec(shape, index_map)

        if k_tiles == 1:
            kernel = functools.partial(_mlp_resident_kernel, h_chunk=hc)
            return pl.pallas_call(
                kernel,
                out_shape=out_shape,
                grid=(n_tiles,),
                in_specs=[
                    _spec((tile_n, F), lambda i: (i, 0)),                    # x streamed
                    _spec((F, H_pad), lambda i: (0, 0), resident=True),      # W1 resident
                    _spec((1, H_pad), lambda i: (0, 0), resident=True),      # b1 resident
                    _spec((H_pad, O_pad), lambda i: (0, 0), resident=True),  # W2 resident
                    _spec((1, O_pad), lambda i: (0, 0), resident=True),      # b2 resident
                ],
                out_specs=_spec((tile_n, O_pad), lambda i: (i, 0)),
                compiler_params=pltpu.CompilerParams(
                    dimension_semantics=("parallel",),
                    vmem_limit_bytes=budget,
                ),
            )

        kernel = functools.partial(_mlp_streamk_kernel, h_chunk=hc)
        return pl.pallas_call(
            kernel,
            out_shape=out_shape,
            grid=(n_tiles, k_tiles),
            in_specs=[
                _spec((tile_n, tile_f), lambda i, k: (i, k)),                # x streamed
                _spec((tile_f, H_pad), lambda i, k: (k, 0)),                 # W1 streamed over K
                _spec((1, H_pad), lambda i, k: (0, 0), resident=True),
                _spec((H_pad, O_pad), lambda i, k: (0, 0), resident=True),
                _spec((1, O_pad), lambda i, k: (0, 0), resident=True),
            ],
            out_specs=_spec((tile_n, O_pad), lambda i, k: (i, 0)),
            scratch_shapes=[pltpu.VMEM((tile_n, H_pad), jnp.float32)],
            compiler_params=pltpu.CompilerParams(
                dimension_semantics=("parallel", "arbitrary"),
                vmem_limit_bytes=budget,
            ),
        )

    try:
        out = _build(True)(x, w1p, b1p, w2p, b2p)
    except Exception:
        # Older JAX / Mosaic builds may reject pl.Buffered(1) single-buffering;
        # fall back to default double-buffered resident operands.
        out = _build(False)(x, w1p, b1p, w2p, b2p)

    return out[:, :O]


# ------------------------------------ demo -----------------------------------

if __name__ == "__main__":
    key = jax.random.PRNGKey(0)
    kx1, kp1, kx2, kp2, kx3, kp3 = jax.random.split(key, 6)

    def reference(x, w1, b1, w2, b2):
        return jnp.maximum(x @ w1 + b1, 0.0) @ w2 + b2

    # --- 1) Net(n_features=32, n_hidden=32, n_output=4), batch=8 -------------
    x = jax.random.normal(kx1, (8, 32), dtype=jnp.float32)
    w1, b1, w2, b2 = init_params(kp1, 32, 32, 4)
    params = prepare_params(w1, b1, w2, b2)               # padded ONCE, at init
    out = net_forward(x, params)
    jax.block_until_ready(out)
    assert out.shape == (8, 4)
    assert jnp.allclose(out, reference(x, w1, b1, w2, b2), atol=1e-5), "f32 mismatch"

    # bf16-resident-weight variant: x stays f32 in HBM, cast per tile in-kernel.
    params_bf16 = prepare_params(w1, b1, w2, b2, param_dtype=jnp.bfloat16)
    out_bf16 = net_forward(x, params_bf16, out_dtype=jnp.bfloat16)
    jax.block_until_ready(out_bf16)
    assert jnp.allclose(out_bf16.astype(jnp.float32), reference(x, w1, b1, w2, b2),
                        atol=1e-1, rtol=1e-2), "bf16 mismatch"

    # --- 2) regression.py-like shapes: Net(8, 10, 1), batch=100 --------------
    # (exercises ragged batch tiles handled by Pallas masking, no x copy)
    x_r = jax.random.normal(kx2, (100, 8), dtype=jnp.float32)
    w1r, b1r, w2r, b2r = init_params(kp2, 8, 10, 1)
    params_r = prepare_params(w1r, b1r, w2r, b2r)
    out_r = net_forward(x_r, params_r)
    jax.block_until_ready(out_r)
    assert out_r.shape == (100, 1)
    assert jnp.allclose(out_r, reference(x_r, w1r, b1r, w2r, b2r), atol=1e-5), \
        "ragged-batch mismatch"

    # --- 3) Larger layer exercising the K-streaming + hidden-chunked path ----
    x_l = jax.random.normal(kx3, (64, 256), dtype=jnp.float32)
    w1l, b1l, w2l, b2l = init_params(kp3, 256, 384, 10)
    params_l = prepare_params(w1l, b1l, w2l, b2l)
    out_l = net_forward(x_l, params_l, stream_features=True, h_chunk=128)
    jax.block_until_ready(out_l)
    assert out_l.shape == (64, 10)
    assert jnp.allclose(out_l, reference(x_l, w1l, b1l, w2l, b2l),
                        atol=1e-4, rtol=1e-5), "K-streaming mismatch"

    print("KERNEL_OK")
</pallas_src>

<mosaic_0001>
module attributes {stable_mosaic.version = 11 : i64} {
  func.func @_mlp_resident_kernel(%arg0: i32, %arg1: memref<8x32xf32, #tpu.memory_space<vmem>>, %arg2: memref<32x128xf32, #tpu.memory_space<vmem>>, %arg3: memref<1x128xf32, #tpu.memory_space<vmem>>, %arg4: memref<128x128xf32, #tpu.memory_space<vmem>>, %arg5: memref<1x128xf32, #tpu.memory_space<vmem>>, %arg6: memref<8x128xf32, #tpu.memory_space<vmem>>) attributes {dimension_semantics = [#tpu.dimension_semantics<parallel>], iteration_bounds = array<i64: 1>, scalar_prefetch = 0 : i64, scratch_operands = 0 : i64, tpu.core_type = #tpu.core_type<tc>, window_params = [{transform_indices = @transform_0, window_bounds = array<i64: 8, 32>}, {pipeline_mode = #tpu.pipeline_mode<synchronous>, transform_indices = @transform_1, window_bounds = array<i64: 32, 128>}, {pipeline_mode = #tpu.pipeline_mode<synchronous>, transform_indices = @transform_2, window_bounds = array<i64: 1, 128>}, {pipeline_mode = #tpu.pipeline_mode<synchronous>, transform_indices = @transform_3, window_bounds = array<i64: 128, 128>}, {pipeline_mode = #tpu.pipeline_mode<synchronous>, transform_indices = @transform_4, window_bounds = array<i64: 1, 128>}, {transform_indices = @transform_5, window_bounds = array<i64: 8, 128>}]} {
    %c0 = arith.constant 0 : index
    %c0_0 = arith.constant 0 : index
    %0 = vector.load %arg1[%c0, %c0_0] : memref<8x32xf32, #tpu.memory_space<vmem>>, vector<8x32xf32>
    %c0_1 = arith.constant 0 : index
    %c0_2 = arith.constant 0 : index
    %1 = vector.load %arg2[%c0_1, %c0_2] : memref<32x128xf32, #tpu.memory_space<vmem>>, vector<32x128xf32>
    %cst = arith.constant dense<0.000000e+00> : vector<8x128xf32>
    %2 = tpu.matmul %0, %1, %cst {dimension_numbers = #tpu.dot_dimension_numbers<[1], [0], [0], [1], [0, 0, 1, 1], [], []>} : vector<8x32xf32>, vector<32x128xf32>, vector<8x128xf32> -> vector<8x128xf32>
    %c0_3 = arith.constant 0 : index
    %c0_4 = arith.constant 0 : index
    %3 = vector.load %arg3[%c0_3, %c0_4] : memref<1x128xf32, #tpu.memory_space<vmem>>, vector<1x128xf32>
    %4 = vector.broadcast %3 : vector<1x128xf32> to vector<8x128xf32>
    %5 = arith.addf %2, %4 : vector<8x128xf32>
    %cst_5 = arith.constant 0.000000e+00 : f32
    %6 = vector.broadcast %cst_5 : f32 to vector<8x128xf32>
    %7 = arith.maximumf %5, %6 : vector<8x128xf32>
    %c0_6 = arith.constant 0 : index
    %c0_7 = arith.constant 0 : index
    %8 = vector.load %arg4[%c0_6, %c0_7] : memref<128x128xf32, #tpu.memory_space<vmem>>, vector<128x128xf32>
    %cst_8 = arith.constant dense<0.000000e+00> : vector<8x128xf32>
    %9 = tpu.matmul %7, %8, %cst_8 {dimension_numbers = #tpu.dot_dimension_numbers<[1], [0], [0], [1], [0, 0, 1, 1], [], []>} : vector<8x128xf32>, vector<128x128xf32>, vector<8x128xf32> -> vector<8x128xf32>
    %c0_9 = arith.constant 0 : index
    %c0_10 = arith.constant 0 : index
    %10 = vector.load %arg5[%c0_9, %c0_10] : memref<1x128xf32, #tpu.memory_space<vmem>>, vector<1x128xf32>
    %11 = vector.broadcast %10 : vector<1x128xf32> to vector<8x128xf32>
    %12 = arith.addf %9, %11 : vector<8x128xf32>
    %c0_11 = arith.constant 0 : index
    %c0_12 = arith.constant 0 : index
    %13 = vector.load %arg6[%c0_11, %c0_12] : memref<8x128xf32, #tpu.memory_space<vmem>>, vector<8x128xf32>
    tpu.vector_store %arg6[%c0_11, %c0_12], %12 {strides = array<i32>} : memref<8x128xf32, #tpu.memory_space<vmem>>, vector<8x128xf32>,
    return
  }
  func.func @transform_0(%arg0: i32) -> (i32, i32) {
    %c0_i32 = arith.constant 0 : i32
    %c0_i32_0 = arith.constant 0 : i32
    return %arg0, %c0_i32 : i32, i32
  }
  func.func @transform_1(%arg0: i32) -> (i32, i32) {
    %c0_i32 = arith.constant 0 : i32
    %c0_i32_0 = arith.constant 0 : i32
    %c0_i32_1 = arith.constant 0 : i32
    return %c0_i32, %c0_i32_0 : i32, i32
  }
  func.func @transform_2(%arg0: i32) -> (i32, i32) {
    %c0_i32 = arith.constant 0 : i32
    %c0_i32_0 = arith.constant 0 : i32
    %c0_i32_1 = arith.constant 0 : i32
    return %c0_i32, %c0_i32_0 : i32, i32
  }
  func.func @transform_3(%arg0: i32) -> (i32, i32) {
    %c0_i32 = arith.constant 0 : i32
    %c0_i32_0 = arith.constant 0 : i32
    %c0_i32_1 = arith.constant 0 : i32
    return %c0_i32, %c0_i32_0 : i32, i32
  }
  func.func @transform_4(%arg0: i32) -> (i32, i32) {
    %c0_i32 = arith.constant 0 : i32
    %c0_i32_0 = arith.constant 0 : i32
    %c0_i32_1 = arith.constant 0 : i32
    return %c0_i32, %c0_i32_0 : i32, i32
  }
  func.func @transform_5(%arg0: i32) -> (i32, i32) {
    %c0_i32 = arith.constant 0 : i32
    %c0_i32_0 = arith.constant 0 : i32
    return %arg0, %c0_i32 : i32, i32
  }
}

module attributes {stable_mosaic.version = 11 : i64} {
  func.func @_mlp_resident_kernel(%arg0: i32, %arg1: memref<8x32xf32, #tpu.memory_space<vmem>>, %arg2: memref<32x128xf32, #tpu.memory_space<vmem>>, %arg3: memref<1x128xf32, #tpu.memory_space<vmem>>, %arg4: memref<128x128xf32, #tpu.memory_space<vmem>>, %arg5: memref<1x128xf32, #tpu.memory_space<vmem>>, %arg6: memref<8x128xf32, #tpu.memory_space<vmem>>) attributes {dimension_semantics = [#tpu.dimension_semantics<parallel>], iteration_bounds = array<i64: 1>, scalar_prefetch = 0 : i64, scratch_operands = 0 : i64, tpu.core_type = #tpu.core_type<tc>, window_params = [{transform_indices = @transform_0, window_bounds = array<i64: 8, 32>}, {pipeline_mode = #tpu.pipeline_mode<synchronous>, transform_indices = @transform_1, window_bounds = array<i64: 32, 128>}, {pipeline_mode = #tpu.pipeline_mode<synchronous>, transform_indices = @transform_2, window_bounds = array<i64: 1, 128>}, {pipeline_mode = #tpu.pipeline_mode<synchronous>, transform_indices = @transform_3, window_bounds = array<i64: 128, 128>}, {pipeline_mode = #tpu.pipeline_mode<synchronous>, transform_indices = @transform_4, window_bounds = array<i64: 1, 128>}, {transform_indices = @transform_5, window_bounds = array<i64: 8, 128>}]} {
    %c0 = arith.constant 0 : index
    %c0_0 = arith.constant 0 : index
    %0 = vector.load %arg1[%c0, %c0_0] : memref<8x32xf32, #tpu.memory_space<vmem>>, vector<8x32xf32>
    %c0_1 = arith.constant 0 : index
    %c0_2 = arith.constant 0 : index
    %1 = vector.load %arg2[%c0_1, %c0_2] : memref<32x128xf32, #tpu.memory_space<vmem>>, vector<32x128xf32>
    %cst = arith.constant dense<0.000000e+00> : vector<8x128xf32>
    %2 = tpu.matmul %0, %1, %cst {dimension_numbers = #tpu.dot_dimension_numbers<[1], [0], [0], [1], [0, 0, 1, 1], [], []>} : vector<8x32xf32>, vector<32x128xf32>, vector<8x128xf32> -> vector<8x128xf32>
    %c0_3 = arith.constant 0 : index
    %c0_4 = arith.constant 0 : index
    %3 = vector.load %arg3[%c0_3, %c0_4] : memref<1x128xf32, #tpu.memory_space<vmem>>, vector<1x128xf32>
    %4 = vector.broadcast %3 : vector<1x128xf32> to vector<8x128xf32>
    %5 = arith.addf %2, %4 : vector<8x128xf32>
    %cst_5 = arith.constant 0.000000e+00 : f32
    %6 = vector.broadcast %cst_5 : f32 to vector<8x128xf32>
    %7 = arith.maximumf %5, %6 : vector<8x128xf32>
    %c0_6 = arith.constant 0 : index
    %c0_7 = arith.constant 0 : index
    %8 = vector.load %arg4[%c0_6, %c0_7] : memref<128x128xf32, #tpu.memory_space<vmem>>, vector<128x128xf32>
    %cst_8 = arith.constant dense<0.000000e+00> : vector<8x128xf32>
    %9 = tpu.matmul %7, %8, %cst_8 {dimension_numbers = #tpu.dot_dimension_numbers<[1], [0], [0], [1], [0, 0, 1, 1], [], []>} : vector<8x128xf32>, vector<128x128xf32>, vector<8x128xf32> -> vector<8x128xf32>
    %c0_9 = arith.constant 0 : index
    %c0_10 = arith.constant 0 : index
    %10 = vector.load %arg5[%c0_9, %c0_10] : memref<1x128xf32, #tpu.memory_space<vmem>>, vector<1x128xf32>
    %11 = vector.broadcast %10 : vector<1x128xf32> to vector<8x128xf32>
    %12 = arith.addf %9, %11 : vector<8x128xf32>
    %c0_11 = arith.constant 0 : index
    %c0_12 = arith.constant 0 : index
    %13 = vector.load %arg6[%c0_11, %c0_12] : memref<8x128xf32, #tpu.memory_space<vmem>>, vector<8x128xf32>
    tpu.vector_store %arg6[%c0_11, %c0_12], %12 {strides = array<i32>} : memref<8x128xf32, #tpu.memory_space<vmem>>, vector<8x128xf32>,
    return
  }
  func.func @transform_0(%arg0: i32) -> (i32, i32) {
    %c0_i32 = arith.constant 0 : i32
    %c0_i32_0 = arith.constant 0 : i32
    return %arg0, %c0_i32 : i32, i32
  }
  func.func @transform_1(%arg0: i32) -> (i32, i32) {
    %c0_i32 = arith.constant 0 : i32
    %c0_i32_0 = arith.constant 0 : i32
    %c0_i32_1 = arith.constant 0 : i32
    return %c0_i32, %c0_i32_0 : i32, i32
  }
  func.func @transform_2(%arg0: i32) -> (i32, i32) {
    %c0_i32 = arith.constant 0 : i32
    %c0_i32_0 = arith.constant 0 : i32
    %c0_i32_1 = arith.constant 0 : i32
    return %c0_i32, %c0_i32_0 : i32, i32
  }
  func.func @transform_3(%arg0: i32) -> (i32, i32) {
    %c0_i32 = arith.constant 0 : i32
    %c0_i32_0 = arith.constant 0 : i32
    %c0_i32_1 = arith.constant 0 : i32
    return %c0_i32, %c0_i32_0 : i32, i32
  }
  func.func @transform_4(%arg0: i32) -> (i32, i32) {
    %c0_i32 = arith.constant 0 : i32
    %c0_i32_0 = arith.constant 0 : i32
    %c0_i32_1 = arith.constant 0 : i32
    return %c0_i32, %c0_i32_0 : i32, i32
  }
  func.func @transform_5(%arg0: i32) -> (i32, i32) {
    %c0_i32 = arith.constant 0 : i32
    %c0_i32_0 = arith.constant 0 : i32
    return %arg0, %c0_i32 : i32, i32
  }
}

</mosaic_0001>

<llo_original>
// kernel: tpu_custom_call.1
$region0: #{tpu_custom_call.1}
  #allocation0 [shape = 'u32[]', space=smem, size = 0x4, offset = 0x4, fixed_abs, tag = 'smem constant byte address 0x4 - core index']
  #allocation1 [shape = 'u32[144,128]{1,0:T(1,128)}', space=vmem, size = 0x12000, scoped, tag = 'internal scratch']
  %s0 = inlined_call_operand.hbm [shape: f32[8,32], index: 0, kind: input, shape index: {}]
  %s1 = inlined_call_operand.hbm [shape: f32[32,128], index: 1, kind: input, shape index: {}]
  %s2 = inlined_call_operand.vmem [shape: f32[1,128], index: 2, kind: input, shape index: {}]
  %s3 = inlined_call_operand.hbm [shape: f32[128,128], index: 3, kind: input, shape index: {}]
  %s4 = inlined_call_operand.vmem [shape: f32[1,128], index: 4, kind: input, shape index: {}]
  %s5 = inlined_call_operand.hbm [shape: f32[8,128], index: 5, kind: output, shape index: {}]
  %s6 = sld [smem:[#allocation0]]
  $region42: #{tpu_custom_call.1} parent=0
    _
  %s8 = ssub.s32 1, %s6
  %s9 = scalar_select 0, %s8, %s6
  $region1: #{tpu_custom_call.1} parent=0
    #allocation2 [shape = 'u8[4096]{0}', space=vmem, size = 0x1000, scoped, tag = 'input window, operand 0, single buffered']
    #allocation3 [shape = 's32[1]{0}', space=sflag, size = 0x4, scoped, tag = 'scoped memory for tpu_custom_call.1']
    #allocation4 [shape = 's32[1]{0}', space=sflag, size = 0x4, scoped, tag = 'scoped memory for tpu_custom_call.1']
    #allocation5 [shape = 'u8[16384]{0}', space=vmem, size = 0x4000, scoped, tag = 'input window, operand 1, single buffered']
    #allocation6 [shape = 's32[1]{0}', space=sflag, size = 0x4, scoped, tag = 'scoped memory for tpu_custom_call.1']
    #allocation7 [shape = 'u8[65536]{0}', space=vmem, size = 0x10000, scoped, tag = 'input window, operand 3, single buffered']
    #allocation8 [shape = 'u8[4096]{0}', space=vmem, size = 0x1000, scoped, tag = 'output window, operand 0, single buffered']
    %10 = vsyncpa [#allocation3], 0
    %11 = vsyncpa [#allocation6], 0
    %12 = vsyncpa [#allocation4], 0
    // Predicated region
    $region2: #{tpu_custom_call.1} parent=1 // pred_check
      _
    $region3: #{tpu_custom_call.1} parent=1 // pred_check_branch
      %14 = sbr.rel (0) target = $region5
    $region4: #{tpu_custom_call.1} parent=1 // pred_region
      %s16 = ssub.s32 128, 128
      %17 = vsyncadd [#allocation3], %s16
      %s19 = sshll.u32 [#allocation2], 4
      %s20 = int_to_ptr.vmem [resolvable:$true] %s19
      %22 = dma.hbm_to_vmem [thread:$0]  %s0, 128, %s20, [#allocation3]
    $region5: #{tpu_custom_call.1} parent=1 // pred_fallthru
      _
    // Predicated region
    $region6: #{tpu_custom_call.1} parent=1 // pred_check
      _
    $region7: #{tpu_custom_call.1} parent=1 // pred_check_branch
      %24 = sbr.rel (0) target = $region9
    $region8: #{tpu_custom_call.1} parent=1 // pred_region
      %s26 = ssub.s32 512, 512
      %27 = vsyncadd [#allocation6], %s26
      %s28 = sshll.u32 [#allocation5], 4
      %s29 = int_to_ptr.vmem [resolvable:$true] %s28
      %34 = dma.hbm_to_vmem [thread:$0]  %s1, 512, %s29, [#allocation6], 128, 128, 8
    $region9: #{tpu_custom_call.1} parent=1 // pred_fallthru
      _
    // Predicated region
    $region10: #{tpu_custom_call.1} parent=1 // pred_check
      _
    $region11: #{tpu_custom_call.1} parent=1 // pred_check_branch
      %36 = sbr.rel (0) target = $region13
    $region12: #{tpu_custom_call.1} parent=1 // pred_region
      _
    $region13: #{tpu_custom_call.1} parent=1 // pred_fallthru
      _
    // Predicated region
    $region14: #{tpu_custom_call.1} parent=1 // pred_check
      _
    $region15: #{tpu_custom_call.1} parent=1 // pred_check_branch
      %38 = sbr.rel (0) target = $region17
    $region16: #{tpu_custom_call.1} parent=1 // pred_region
      %s40 = ssub.s32 2048, 2048
      %41 = vsyncadd [#allocation6], %s40
      %s42 = sshll.u32 [#allocation7], 4
      %s43 = int_to_ptr.vmem [resolvable:$true] %s42
      %48 = dma.hbm_to_vmem [thread:$0]  %s3, 2048, %s43, [#allocation6], 128, 128, 8
    $region17: #{tpu_custom_call.1} parent=1 // pred_fallthru
      _
    // Predicated region
    $region18: #{tpu_custom_call.1} parent=1 // pred_check
      _
    $region19: #{tpu_custom_call.1} parent=1 // pred_check_branch
      %50 = sbr.rel (0) target = $region21
    $region20: #{tpu_custom_call.1} parent=1 // pred_region
      _
    $region21: #{tpu_custom_call.1} parent=1 // pred_fallthru
      _
    // Predicated region
    $region22: #{tpu_custom_call.1} parent=1 // pred_check
      _
    $region23: #{tpu_custom_call.1} parent=1 // pred_check_branch
      %52 = sbr.rel (0) target = $region25
    $region24: #{tpu_custom_call.1} parent=1 // pred_region
      %53 = dma.done [#allocation3], 128
    $region25: #{tpu_custom_call.1} parent=1 // pred_fallthru
      _
    // Predicated region
    $region26: #{tpu_custom_call.1} parent=1 // pred_check
      _
    $region27: #{tpu_custom_call.1} parent=1 // pred_check_branch
      %55 = sbr.rel (0) target = $region29
    $region28: #{tpu_custom_call.1} parent=1 // pred_region
      %56 = dma.done [#allocation6], 512
    $region29: #{tpu_custom_call.1} parent=1 // pred_fallthru
      _
    // Predicated region
    $region30: #{tpu_custom_call.1} parent=1 // pred_check
      _
    $region31: #{tpu_custom_call.1} parent=1 // pred_check_branch
      %58 = sbr.rel (0) target = $region33
    $region32: #{tpu_custom_call.1} parent=1 // pred_region
      %59 = dma.done [#allocation6], 2048
    $region33: #{tpu_custom_call.1} parent=1 // pred_fallthru
      _
    %v60 = vld [vmem:[#allocation2] sm:$0xff]
    %v61 = vld [vmem:[#allocation5] sm:$0xff]
    %v62 = vld [vmem:[#allocation5 + $0x8] sm:$0xff]
    %v63 = vld [vmem:[#allocation5 + $0x10] sm:$0xff]
    %v64 = vld [vmem:[#allocation5 + $0x18] sm:$0xff]
    %v65 = vld [vmem:[%s2] sm:$0x1]
    %v67 = vlaneseq
    %v68 = vshrl.u32 %v67, 7
    %v69 = vsub.s32 0, %v68
    %v70 = vrot.slane %v65, %v69
    %vm72 = vcmask 261120
    %v74 = vsel %vm72, %v60, 0
    %76 = vmatprep.subr.mxu0 0.0
    %77 = vmatpush1.msra.mxu0 %v61
    %78 = vmatprep.subr.mxu0 0.0
    %79 = vmatpush1.msra.mxu0 %v62
    %80 = vmatprep.subr.mxu0 0.0
    %81 = vmatpush1.msra.mxu0 %v63
    %82 = vmatprep.subr.mxu0 0.0
    %83 = vmatpush1.msra.mxu0 %v64
    %84 = vmatprep.subr.mxu0 0.0
    %85 = vmatpush1.msra.mxu0 0.0
    %86 = vmatprep.subr.mxu0 0.0
    %87 = vmatpush1.msra.mxu0 0.0
    %88 = vmatprep.subr.mxu0 0.0
    %89 = vmatpush1.msra.mxu0 0.0
    %90 = vmatprep.subr.mxu0 0.0
    %91 = vmatpush1.msra.mxu0 0.0
    %92 = vmatprep.subr.mxu0 0.0
    %93 = vmatpush1.msra.mxu0 0.0
    %94 = vmatprep.subr.mxu0 0.0
    %95 = vmatpush1.msra.mxu0 0.0
    %96 = vmatprep.subr.mxu0 0.0
    %97 = vmatpush1.msra.mxu0 0.0
    %98 = vmatprep.subr.mxu0 0.0
    %99 = vmatpush1.msra.mxu0 0.0
    %100 = vmatprep.subr.mxu0 0.0
    %101 = vmatpush1.msra.mxu0 0.0
    %102 = vmatprep.subr.mxu0 0.0
    %103 = vmatpush1.msra.mxu0 0.0
    %104 = vmatprep.subr.mxu0 0.0
    %105 = vmatpush1.msra.mxu0 0.0
    %106 = vmatprep.subr.mxu0 0.0
    %107 = vmatpush1.msra.mxu0 0.0
    %108 = vmatprep.subr.mxu0 0.0
    %109 = vmatpush1.msra.mxu0 0.0
    %110 = vmatprep.subr.mxu0 0.0
    %111 = vmatpush1.msra.mxu0 0.0
    %112 = vmatprep.subr.mxu0 0.0
    %113 = vmatpush1.msra.mxu0 0.0
    %114 = vmatprep.subr.mxu0 0.0
    %115 = vmatpush1.msra.mxu0 0.0
    %116 = vmatprep.subr.mxu0 0.0
    %117 = vmatpush1.msra.mxu0 0.0
    %118 = vmatprep.subr.mxu0 0.0
    %119 = vmatpush1.msra.mxu0 0.0
    %120 = vmatprep.subr.mxu0 0.0
    %121 = vmatpush1.msra.mxu0 0.0
    %122 = vmatprep.subr.mxu0 0.0
    %123 = vmatpush1.msra.mxu0 0.0
    %124 = vmatprep.subr.mxu0 0.0
    %125 = vmatpush1.msra.mxu0 0.0
    %126 = vmatprep.subr.mxu0 0.0
    %127 = vmatpush1.msra.mxu0 0.0
    %128 = vmatprep.subr.mxu0 0.0
    %129 = vmatpush1.msra.mxu0 0.0
    %130 = vmatprep.subr.mxu0 0.0
    %131 = vmatpush1.msra.mxu0 0.0
    %132 = vmatprep.subr.mxu0 0.0
    %133 = vmatpush1.msra.mxu0 0.0
    %134 = vmatprep.subr.mxu0 0.0
    %135 = vmatpush1.msra.mxu0 0.0
    %136 = vmatprep.subr.mxu0 0.0
    %137 = vmatpush1.msra.mxu0 0.0
    %138 = vmatprep.subr.mxu0 0.0
    %139 = vmatpush1.msra.mxu0 0.0
    %140 = vmatprep.mubr.f32.mxu0 0.0
    %141 = vmatmul.mubr.f32.gmra.mrb[0].mxu0 %v74
    %v142 = vpop.f32.mrb[0].mxu0
    %v143 = vadd.f32 %v70, %v142
    %v144 = vpop.f32.mrb[0].mxu0
    %145 = vdwg.mxu0
    %v146 = vmax.f32 %v143, 0.0
    %v147 = vld [vmem:[#allocation7] sm:$0xff]
    %v148 = vld [vmem:[#allocation7 + $0x8] sm:$0xff]
    %v149 = vld [vmem:[#allocation7 + $0x10] sm:$0xff]
    %v150 = vld [vmem:[#allocation7 + $0x18] sm:$0xff]
    %v151 = vld [vmem:[#allocation7 + $0x20] sm:$0xff]
    %v152 = vld [vmem:[#allocation7 + $0x28] sm:$0xff]
    %v153 = vld [vmem:[#allocation7 + $0x30] sm:$0xff]
    %v154 = vld [vmem:[#allocation7 + $0x38] sm:$0xff]
    %v155 = vld [vmem:[#allocation7 + $0x40] sm:$0xff]
    %v156 = vld [vmem:[#allocation7 + $0x48] sm:$0xff]
    %v157 = vld [vmem:[#allocation7 + $0x50] sm:$0xff]
    %v158 = vld [vmem:[#allocation7 + $0x58] sm:$0xff]
    %v159 = vld [vmem:[#allocation7 + $0x60] sm:$0xff]
    %v160 = vld [vmem:[#allocation7 + $0x68] sm:$0xff]
    %v161 = vld [vmem:[#allocation7 + $0x70] sm:$0xff]
    %v162 = vld [vmem:[#allocation7 + $0x78] sm:$0xff]
    %v163 = vld [vmem:[%s4] sm:$0x1]
    %v165 = vlaneseq
    %v166 = vshrl.u32 %v165, 7
    %v167 = vsub.s32 0, %v166
    %v168 = vrot.slane %v163, %v167
    %170 = vmatprep.subr.mxu0 0.0
    %171 = vmatpush1.msra.mxu0 %v147
    %172 = vmatprep.subr.mxu0 0.0
    %173 = vmatpush1.msra.mxu0 %v148
    %174 = vmatprep.subr.mxu0 0.0
    %175 = vmatpush1.msra.mxu0 %v149
    %176 = vmatprep.subr.mxu0 0.0
    %177 = vmatpush1.msra.mxu0 %v150
    %178 = vmatprep.subr.mxu0 0.0
    %179 = vmatpush1.msra.mxu0 %v151
    %180 = vmatprep.subr.mxu0 0.0
    %181 = vmatpush1.msra.mxu0 %v152
    %182 = vmatprep.subr.mxu0 0.0
    %183 = vmatpush1.msra.mxu0 %v153
    %184 = vmatprep.subr.mxu0 0.0
    %185 = vmatpush1.msra.mxu0 %v154
    %186 = vmatprep.subr.mxu0 0.0
    %187 = vmatpush1.msra.mxu0 %v155
    %188 = vmatprep.subr.mxu0 0.0
    %189 = vmatpush1.msra.mxu0 %v156
    %190 = vmatprep.subr.mxu0 0.0
    %191 = vmatpush1.msra.mxu0 %v157
    %192 = vmatprep.subr.mxu0 0.0
    %193 = vmatpush1.msra.mxu0 %v158
    %194 = vmatprep.subr.mxu0 0.0
    %195 = vmatpush1.msra.mxu0 %v159
    %196 = vmatprep.subr.mxu0 0.0
    %197 = vmatpush1.msra.mxu0 %v160
    %198 = vmatprep.subr.mxu0 0.0
    %199 = vmatpush1.msra.mxu0 %v161
    %200 = vmatprep.subr.mxu0 0.0
    %201 = vmatpush1.msra.mxu0 %v162
    %202 = vmatprep.subr.mxu0 0.0
    %203 = vmatpush1.msra.mxu0 0.0
    %204 = vmatprep.subr.mxu0 0.0
    %205 = vmatpush1.msra.mxu0 0.0
    %206 = vmatprep.subr.mxu0 0.0
    %207 = vmatpush1.msra.mxu0 0.0
    %208 = vmatprep.subr.mxu0 0.0
    %209 = vmatpush1.msra.mxu0 0.0
    %210 = vmatprep.subr.mxu0 0.0
    %211 = vmatpush1.msra.mxu0 0.0
    %212 = vmatprep.subr.mxu0 0.0
    %213 = vmatpush1.msra.mxu0 0.0
    %214 = vmatprep.subr.mxu0 0.0
    %215 = vmatpush1.msra.mxu0 0.0
    %216 = vmatprep.subr.mxu0 0.0
    %217 = vmatpush1.msra.mxu0 0.0
    %218 = vmatprep.subr.mxu0 0.0
    %219 = vmatpush1.msra.mxu0 0.0
    %220 = vmatprep.subr.mxu0 0.0
    %221 = vmatpush1.msra.mxu0 0.0
    %222 = vmatprep.subr.mxu0 0.0
    %223 = vmatpush1.msra.mxu0 0.0
    %224 = vmatprep.subr.mxu0 0.0
    %225 = vmatpush1.msra.mxu0 0.0
    %226 = vmatprep.subr.mxu0 0.0
    %227 = vmatpush1.msra.mxu0 0.0
    %228 = vmatprep.subr.mxu0 0.0
    %229 = vmatpush1.msra.mxu0 0.0
    %230 = vmatprep.subr.mxu0 0.0
    %231 = vmatpush1.msra.mxu0 0.0
    %232 = vmatprep.subr.mxu0 0.0
    %233 = vmatpush1.msra.mxu0 0.0
    %234 = vmatprep.mubr.f32.mxu0 0.0
    %235 = vmatmul.mubr.f32.gmra.mrb[0].mxu0 %v146
    %v236 = vpop.f32.mrb[0].mxu0
    %v237 = vadd.f32 %v168, %v236
    %v238 = vpop.f32.mrb[0].mxu0
    %239 = vdwg.mxu0
    %240 = vst [vmem:[#allocation8] sm:$0xff] %v237
    // Predicated region
    $region34: #{tpu_custom_call.1} parent=1 // pred_check
      _
    $region35: #{tpu_custom_call.1} parent=1 // pred_check_branch
      %242 = sbr.rel (0) target = $region37
    $region36: #{tpu_custom_call.1} parent=1 // pred_region
      %s244 = ssub.s32 128, 128
      %245 = vsyncadd [#allocation4], %s244
      %s247 = sshll.u32 [#allocation8], 4
      %s248 = int_to_ptr.vmem [resolvable:$true] %s247
      %250 = dma.vmem_to_hbm [thread:$0]  %s248, 128, %s5, [#allocation4]
    $region37: #{tpu_custom_call.1} parent=1 // pred_fallthru
      _
    // Predicated region
    $region38: #{tpu_custom_call.1} parent=1 // pred_check
      _
    $region39: #{tpu_custom_call.1} parent=1 // pred_check_branch
      %252 = sbr.rel (0) target = $region41
    $region40: #{tpu_custom_call.1} parent=1 // pred_region
      %253 = dma.done [#allocation4], 128
    $region41: #{tpu_custom_call.1} parent=1 // pred_fallthru
      _
    %254 = vsyncpa [#allocation3], 1
    %255 = vsyncpa [#allocation6], 1
    %256 = vsyncpa [#allocation4], 1

// kernel: tpu_custom_call.1
$region0: #{tpu_custom_call.1}
  #allocation0 [shape = 'u32[]', space=smem, size = 0x4, offset = 0x4, fixed_abs, tag = 'smem constant byte address 0x4 - core index']
  #allocation1 [shape = 'u32[144,128]{1,0:T(1,128)}', space=vmem, size = 0x12000, scoped, tag = 'internal scratch']
  %s0 = inlined_call_operand.hbm [shape: f32[8,32], index: 0, kind: input, shape index: {}]
  %s1 = inlined_call_operand.hbm [shape: f32[32,128], index: 1, kind: input, shape index: {}]
  %s2 = inlined_call_operand.vmem [shape: f32[1,128], index: 2, kind: input, shape index: {}]
  %s3 = inlined_call_operand.hbm [shape: f32[128,128], index: 3, kind: input, shape index: {}]
  %s4 = inlined_call_operand.vmem [shape: f32[1,128], index: 4, kind: input, shape index: {}]
  %s5 = inlined_call_operand.hbm [shape: f32[8,128], index: 5, kind: output, shape index: {}]
  %s6 = sld [smem:[#allocation0]]
  $region42: #{tpu_custom_call.1} parent=0
    _
  %s8 = ssub.s32 1, %s6
  %s9 = scalar_select 0, %s8, %s6
  $region1: #{tpu_custom_call.1} parent=0
    #allocation2 [shape = 'u8[4096]{0}', space=vmem, size = 0x1000, scoped, tag = 'input window, operand 0, single buffered']
    #allocation3 [shape = 's32[1]{0}', space=sflag, size = 0x4, scoped, tag = 'scoped memory for tpu_custom_call.1']
    #allocation4 [shape = 's32[1]{0}', space=sflag, size = 0x4, scoped, tag = 'scoped memory for tpu_custom_call.1']
    #allocation5 [shape = 'u8[16384]{0}', space=vmem, size = 0x4000, scoped, tag = 'input window, operand 1, single buffered']
    #allocation6 [shape = 's32[1]{0}', space=sflag, size = 0x4, scoped, tag = 'scoped memory for tpu_custom_call.1']
    #allocation7 [shape = 'u8[65536]{0}', space=vmem, size = 0x10000, scoped, tag = 'input window, operand 3, single buffered']
    #allocation8 [shape = 'u8[4096]{0}', space=vmem, size = 0x1000, scoped, tag = 'output window, operand 0, single buffered']
    %10 = vsyncpa [#allocation3], 0
    %11 = vsyncpa [#allocation6], 0
    %12 = vsyncpa [#allocation4], 0
    // Predicated region
    $region2: #{tpu_custom_call.1} parent=1 // pred_check
      _
    $region3: #{tpu_custom_call.1} parent=1 // pred_check_branch
      %14 = sbr.rel (0) target = $region5
    $region4: #{tpu_custom_call.1} parent=1 // pred_region
      %s16 = ssub.s32 128, 128
      %17 = vsyncadd [#allocation3], %s16
      %s19 = sshll.u32 [#allocation2], 4
      %s20 = int_to_ptr.vmem [resolvable:$true] %s19
      %22 = dma.hbm_to_vmem [thread:$0]  %s0, 128, %s20, [#allocation3]
    $region5: #{tpu_custom_call.1} parent=1 // pred_fallthru
      _
    // Predicated region
    $region6: #{tpu_custom_call.1} parent=1 // pred_check
      _
    $region7: #{tpu_custom_call.1} parent=1 // pred_check_branch
      %24 = sbr.rel (0) target = $region9
    $region8: #{tpu_custom_call.1} parent=1 // pred_region
      %s26 = ssub.s32 512, 512
      %27 = vsyncadd [#allocation6], %s26
      %s28 = sshll.u32 [#allocation5], 4
      %s29 = int_to_ptr.vmem [resolvable:$true] %s28
      %34 = dma.hbm_to_vmem [thread:$0]  %s1, 512, %s29, [#allocation6], 128, 128, 8
    $region9: #{tpu_custom_call.1} parent=1 // pred_fallthru
      _
    // Predicated region
    $region10: #{tpu_custom_call.1} parent=1 // pred_check
      _
    $region11: #{tpu_custom_call.1} parent=1 // pred_check_branch
      %36 = sbr.rel (0) target = $region13
    $region12: #{tpu_custom_call.1} parent=1 // pred_region
      _
    $region13: #{tpu_custom_call.1} parent=1 // pred_fallthru
      _
    // Predicated region
    $region14: #{tpu_custom_call.1} parent=1 // pred_check
      _
    $region15: #{tpu_custom_call.1} parent=1 // pred_check_branch
      %38 = sbr.rel (0) target = $region17
    $region16: #{tpu_custom_call.1} parent=1 // pred_region
      %s40 = ssub.s32 2048, 2048
      %41 = vsyncadd [#allocation6], %s40
      %s42 = sshll.u32 [#allocation7], 4
      %s43 = int_to_ptr.vmem [resolvable:$true] %s42
      %48 = dma.hbm_to_vmem [thread:$0]  %s3, 2048, %s43, [#allocation6], 128, 128, 8
    $region17: #{tpu_custom_call.1} parent=1 // pred_fallthru
      _
    // Predicated region
    $region18: #{tpu_custom_call.1} parent=1 // pred_check
      _
    $region19: #{tpu_custom_call.1} parent=1 // pred_check_branch
      %50 = sbr.rel (0) target = $region21
    $region20: #{tpu_custom_call.1} parent=1 // pred_region
      _
    $region21: #{tpu_custom_call.1} parent=1 // pred_fallthru
      _
    // Predicated region
    $region22: #{tpu_custom_call.1} parent=1 // pred_check
      _
    $region23: #{tpu_custom_call.1} parent=1 // pred_check_branch
      %52 = sbr.rel (0) target = $region25
    $region24: #{tpu_custom_call.1} parent=1 // pred_region
      %53 = dma.done [#allocation3], 128
    $region25: #{tpu_custom_call.1} parent=1 // pred_fallthru
      _
    // Predicated region
    $region26: #{tpu_custom_call.1} parent=1 // pred_check
      _
    $region27: #{tpu_custom_call.1} parent=1 // pred_check_branch
      %55 = sbr.rel (0) target = $region29
    $region28: #{tpu_custom_call.1} parent=1 // pred_region
      %56 = dma.done [#allocation6], 512
    $region29: #{tpu_custom_call.1} parent=1 // pred_fallthru
      _
    // Predicated region
    $region30: #{tpu_custom_call.1} parent=1 // pred_check
      _
    $region31: #{tpu_custom_call.1} parent=1 // pred_check_branch
      %58 = sbr.rel (0) target = $region33
    $region32: #{tpu_custom_call.1} parent=1 // pred_region
      %59 = dma.done [#allocation6], 2048
    $region33: #{tpu_custom_call.1} parent=1 // pred_fallthru
      _
    %v60 = vld [vmem:[#allocation2] sm:$0xff]
    %v61 = vld [vmem:[#allocation5] sm:$0xff]
    %v62 = vld [vmem:[#allocation5 + $0x8] sm:$0xff]
    %v63 = vld [vmem:[#allocation5 + $0x10] sm:$0xff]
    %v64 = vld [vmem:[#allocation5 + $0x18] sm:$0xff]
    %v65 = vld [vmem:[%s2] sm:$0x1]
    %v67 = vlaneseq
    %v68 = vshrl.u32 %v67, 7
    %v69 = vsub.s32 0, %v68
    %v70 = vrot.slane %v65, %v69
    %vm72 = vcmask 261120
    %v74 = vsel %vm72, %v60, 0
    %76 = vmatprep.subr.mxu0 0.0
    %77 = vmatpush1.msra.mxu0 %v61
    %78 = vmatprep.subr.mxu0 0.0
    %79 = vmatpush1.msra.mxu0 %v62
    %80 = vmatprep.subr.mxu0 0.0
    %81 = vmatpush1.msra.mxu0 %v63
    %82 = vmatprep.subr.mxu0 0.0
    %83 = vmatpush1.msra.mxu0 %v64
    %84 = vmatprep.subr.mxu0 0.0
    %85 = vmatpush1.msra.mxu0 0.0
    %86 = vmatprep.subr.mxu0 0.0
    %87 = vmatpush1.msra.mxu0 0.0
    %88 = vmatprep.subr.mxu0 0.0
    %89 = vmatpush1.msra.mxu0 0.0
    %90 = vmatprep.subr.mxu0 0.0
    %91 = vmatpush1.msra.mxu0 0.0
    %92 = vmatprep.subr.mxu0 0.0
    %93 = vmatpush1.msra.mxu0 0.0
    %94 = vmatprep.subr.mxu0 0.0
    %95 = vmatpush1.msra.mxu0 0.0
    %96 = vmatprep.subr.mxu0 0.0
    %97 = vmatpush1.msra.mxu0 0.0
    %98 = vmatprep.subr.mxu0 0.0
    %99 = vmatpush1.msra.mxu0 0.0
    %100 = vmatprep.subr.mxu0 0.0
    %101 = vmatpush1.msra.mxu0 0.0
    %102 = vmatprep.subr.mxu0 0.0
    %103 = vmatpush1.msra.mxu0 0.0
    %104 = vmatprep.subr.mxu0 0.0
    %105 = vmatpush1.msra.mxu0 0.0
    %106 = vmatprep.subr.mxu0 0.0
    %107 = vmatpush1.msra.mxu0 0.0
    %108 = vmatprep.subr.mxu0 0.0
    %109 = vmatpush1.msra.mxu0 0.0
    %110 = vmatprep.subr.mxu0 0.0
    %111 = vmatpush1.msra.mxu0 0.0
    %112 = vmatprep.subr.mxu0 0.0
    %113 = vmatpush1.msra.mxu0 0.0
    %114 = vmatprep.subr.mxu0 0.0
    %115 = vmatpush1.msra.mxu0 0.0
    %116 = vmatprep.subr.mxu0 0.0
    %117 = vmatpush1.msra.mxu0 0.0
    %118 = vmatprep.subr.mxu0 0.0
    %119 = vmatpush1.msra.mxu0 0.0
    %120 = vmatprep.subr.mxu0 0.0
    %121 = vmatpush1.msra.mxu0 0.0
    %122 = vmatprep.subr.mxu0 0.0
    %123 = vmatpush1.msra.mxu0 0.0
    %124 = vmatprep.subr.mxu0 0.0
    %125 = vmatpush1.msra.mxu0 0.0
    %126 = vmatprep.subr.mxu0 0.0
    %127 = vmatpush1.msra.mxu0 0.0
    %128 = vmatprep.subr.mxu0 0.0
    %129 = vmatpush1.msra.mxu0 0.0
    %130 = vmatprep.subr.mxu0 0.0
    %131 = vmatpush1.msra.mxu0 0.0
    %132 = vmatprep.subr.mxu0 0.0
    %133 = vmatpush1.msra.mxu0 0.0
    %134 = vmatprep.subr.mxu0 0.0
    %135 = vmatpush1.msra.mxu0 0.0
    %136 = vmatprep.subr.mxu0 0.0
    %137 = vmatpush1.msra.mxu0 0.0
    %138 = vmatprep.subr.mxu0 0.0
    %139 = vmatpush1.msra.mxu0 0.0
    %140 = vmatprep.mubr.f32.mxu0 0.0
    %141 = vmatmul.mubr.f32.gmra.mrb[0].mxu0 %v74
    %v142 = vpop.f32.mrb[0].mxu0
    %v143 = vadd.f32 %v70, %v142
    %v144 = vpop.f32.mrb[0].mxu0
    %145 = vdwg.mxu0
    %v146 = vmax.f32 %v143, 0.0
    %v147 = vld [vmem:[#allocation7] sm:$0xff]
    %v148 = vld [vmem:[#allocation7 + $0x8] sm:$0xff]
    %v149 = vld [vmem:[#allocation7 + $0x10] sm:$0xff]
    %v150 = vld [vmem:[#allocation7 + $0x18] sm:$0xff]
    %v151 = vld [vmem:[#allocation7 + $0x20] sm:$0xff]
    %v152 = vld [vmem:[#allocation7 + $0x28] sm:$0xff]
    %v153 = vld [vmem:[#allocation7 + $0x30] sm:$0xff]
    %v154 = vld [vmem:[#allocation7 + $0x38] sm:$0xff]
    %v155 = vld [vmem:[#allocation7 + $0x40] sm:$0xff]
    %v156 = vld [vmem:[#allocation7 + $0x48] sm:$0xff]
    %v157 = vld [vmem:[#allocation7 + $0x50] sm:$0xff]
    %v158 = vld [vmem:[#allocation7 + $0x58] sm:$0xff]
    %v159 = vld [vmem:[#allocation7 + $0x60] sm:$0xff]
    %v160 = vld [vmem:[#allocation7 + $0x68] sm:$0xff]
    %v161 = vld [vmem:[#allocation7 + $0x70] sm:$0xff]
    %v162 = vld [vmem:[#allocation7 + $0x78] sm:$0xff]
    %v163 = vld [vmem:[%s4] sm:$0x1]
    %v165 = vlaneseq
    %v166 = vshrl.u32 %v165, 7
    %v167 = vsub.s32 0, %v166
    %v168 = vrot.slane %v163, %v167
    %170 = vmatprep.subr.mxu0 0.0
    %171 = vmatpush1.msra.mxu0 %v147
    %172 = vmatprep.subr.mxu0 0.0
    %173 = vmatpush1.msra.mxu0 %v148
    %174 = vmatprep.subr.mxu0 0.0
    %175 = vmatpush1.msra.mxu0 %v149
    %176 = vmatprep.subr.mxu0 0.0
    %177 = vmatpush1.msra.mxu0 %v150
    %178 = vmatprep.subr.mxu0 0.0
    %179 = vmatpush1.msra.mxu0 %v151
    %180 = vmatprep.subr.mxu0 0.0
    %181 = vmatpush1.msra.mxu0 %v152
    %182 = vmatprep.subr.mxu0 0.0
    %183 = vmatpush1.msra.mxu0 %v153
    %184 = vmatprep.subr.mxu0 0.0
    %185 = vmatpush1.msra.mxu0 %v154
    %186 = vmatprep.subr.mxu0 0.0
    %187 = vmatpush1.msra.mxu0 %v155
    %188 = vmatprep.subr.mxu0 0.0
    %189 = vmatpush1.msra.mxu0 %v156
    %190 = vmatprep.subr.mxu0 0.0
    %191 = vmatpush1.msra.mxu0 %v157
    %192 = vmatprep.subr.mxu0 0.0
    %193 = vmatpush1.msra.mxu0 %v158
    %194 = vmatprep.subr.mxu0 0.0
    %195 = vmatpush1.msra.mxu0 %v159
    %196 = vmatprep.subr.mxu0 0.0
    %197 = vmatpush1.msra.mxu0 %v160
    %198 = vmatprep.subr.mxu0 0.0
    %199 = vmatpush1.msra.mxu0 %v161
    %200 = vmatprep.subr.mxu0 0.0
    %201 = vmatpush1.msra.mxu0 %v162
    %202 = vmatprep.subr.mxu0 0.0
    %203 = vmatpush1.msra.mxu0 0.0
    %204 = vmatprep.subr.mxu0 0.0
    %205 = vmatpush1.msra.mxu0 0.0
    %206 = vmatprep.subr.mxu0 0.0
    %207 = vmatpush1.msra.mxu0 0.0
    %208 = vmatprep.subr.mxu0 0.0
    %209 = vmatpush1.msra.mxu0 0.0
    %210 = vmatprep.subr.mxu0 0.0
    %211 = vmatpush1.msra.mxu0 0.0
    %212 = vmatprep.subr.mxu0 0.0
    %213 = vmatpush1.msra.mxu0 0.0
    %214 = vmatprep.subr.mxu0 0.0
    %215 = vmatpush1.msra.mxu0 0.0
    %216 = vmatprep.subr.mxu0 0.0
    %217 = vmatpush1.msra.mxu0 0.0
    %218 = vmatprep.subr.mxu0 0.0
    %219 = vmatpush1.msra.mxu0 0.0
    %220 = vmatprep.subr.mxu0 0.0
    %221 = vmatpush1.msra.mxu0 0.0
    %222 = vmatprep.subr.mxu0 0.0
    %223 = vmatpush1.msra.mxu0 0.0
    %224 = vmatprep.subr.mxu0 0.0
    %225 = vmatpush1.msra.mxu0 0.0
    %226 = vmatprep.subr.mxu0 0.0
    %227 = vmatpush1.msra.mxu0 0.0
    %228 = vmatprep.subr.mxu0 0.0
    %229 = vmatpush1.msra.mxu0 0.0
    %230 = vmatprep.subr.mxu0 0.0
    %231 = vmatpush1.msra.mxu0 0.0
    %232 = vmatprep.subr.mxu0 0.0
    %233 = vmatpush1.msra.mxu0 0.0
    %234 = vmatprep.mubr.f32.mxu0 0.0
    %235 = vmatmul.mubr.f32.gmra.mrb[0].mxu0 %v146
    %v236 = vpop.f32.mrb[0].mxu0
    %v237 = vadd.f32 %v168, %v236
    %v238 = vpop.f32.mrb[0].mxu0
    %239 = vdwg.mxu0
    %240 = vst [vmem:[#allocation8] sm:$0xff] %v237
    // Predicated region
    $region34: #{tpu_custom_call.1} parent=1 // pred_check
      _
    $region35: #{tpu_custom_call.1} parent=1 // pred_check_branch
      %242 = sbr.rel (0) target = $region37
    $region36: #{tpu_custom_call.1} parent=1 // pred_region
      %s244 = ssub.s32 128, 128
      %245 = vsyncadd [#allocation4], %s244
      %s247 = sshll.u32 [#allocation8], 4
      %s248 = int_to_ptr.vmem [resolvable:$true] %s247
      %250 = dma.vmem_to_hbm [thread:$0]  %s248, 128, %s5, [#allocation4]
    $region37: #{tpu_custom_call.1} parent=1 // pred_fallthru
      _
    // Predicated region
    $region38: #{tpu_custom_call.1} parent=1 // pred_check
      _
    $region39: #{tpu_custom_call.1} parent=1 // pred_check_branch
      %252 = sbr.rel (0) target = $region41
    $region40: #{tpu_custom_call.1} parent=1 // pred_region
      %253 = dma.done [#allocation4], 128
    $region41: #{tpu_custom_call.1} parent=1 // pred_fallthru
      _
    %254 = vsyncpa [#allocation3], 1
    %255 = vsyncpa [#allocation6], 1
    %256 = vsyncpa [#allocation4], 1

</llo_original>
